<compile_context>
chip_gen: v7x
topology: tpu7x:2x2x1
jax: 0.10.0
libtpu: 0.0.40
codegen_flags: <defaults>
</compile_context>

<pallas_src>
import functools
import numpy as np
import jax
import jax.numpy as jnp
from jax import lax
from jax.experimental import pallas as pl
from jax.experimental.pallas import tpu as pltpu


def _round_up(x, m):
    return (x + m - 1) // m * m


# ----------------------------------------------------------------------------
# Pallas kernel: one grid step handles G_TILE bags.
# ----------------------------------------------------------------------------
def bagre_kernel(off_ref, cnt_ref,              # scalar-prefetch (SMEM, int32)
                 h_ref, w_ref, b_ref, y_ref,    # inputs
                 logits_ref, loss_ref,          # outputs
                 *, g_tile, max_bag_pad, n_cls):
    """
    off_ref/cnt_ref : SMEM int32 [G_pad]   per-bag row offset (8-aligned) / size
    h_ref           : VMEM bf16 [B_alloc, H_pad]  hidden, packed bag-by-bag
    w_ref           : VMEM bf16 [H_pad, C_pad]    classifier weight (transposed)
    b_ref           : VMEM f32  [1, C_pad]        classifier bias
    y_ref           : VMEM f32  [g_tile, C_pad]   one-hot labels for this tile
    logits_ref      : VMEM f32  [g_tile, C_pad]
    loss_ref        : VMEM f32  [g_tile, C_pad]   masked per-element BCE terms
    """
    t = pl.program_id(0)
    h_pad = h_ref.shape[1]
    c_pad = logits_ref.shape[1]

    # ---- aggr == 'mean': segment mean over each bag's member rows (VPU/XLU) --
    mean_rows = []
    valid_rows = []
    for j in range(g_tile):                              # static unroll (8)
        g = t * g_tile + j
        off = pl.multiple_of(off_ref[g], 8)              # bags packed 8-aligned
        cnt = cnt_ref[g]
        blk = h_ref[pl.ds(off, max_bag_pad), :].astype(jnp.float32)
        row_ids = lax.broadcasted_iota(jnp.int32, (max_bag_pad, h_pad), 0)
        member = (row_ids < cnt).astype(jnp.float32)     # rows >= |bag| masked
        inv = jnp.where(cnt > 0, 1.0 / cnt.astype(jnp.float32), 0.0)
        mean_rows.append(jnp.sum(blk * member, axis=0, keepdims=True) * inv)
        valid_rows.append(jnp.where(cnt > 0, 1.0, 0.0)
                          * jnp.ones((1, c_pad), jnp.float32))
    sel_h = jnp.concatenate(mean_rows, axis=0)           # [g_tile, H_pad] f32
    bag_valid = jnp.concatenate(valid_rows, axis=0)      # [g_tile, C_pad] f32

    # ---- classifier: bf16 operands on the MXU, f32 accumulation --------------
    logits = jnp.dot(sel_h.astype(jnp.bfloat16), w_ref[...],
                     preferred_element_type=jnp.float32) + b_ref[...]
    logits_ref[...] = logits                             # lane-dense (8,128) store

    # ---- criterion == 'binary': BCEWithLogitsLoss elements (stable, f32) -----
    y = y_ref[...]
    bce = (jnp.maximum(logits, 0.0) - logits * y
           + jnp.log1p(jnp.exp(-jnp.abs(logits))))
    cls_ids = lax.broadcasted_iota(jnp.int32, (g_tile, c_pad), 1)
    cls_valid = (cls_ids < n_cls).astype(jnp.float32)    # mask padded classes
    loss_ref[...] = bce * bag_valid * cls_valid          # mask padded bags too


# ----------------------------------------------------------------------------
# Wrapper
# ----------------------------------------------------------------------------
def bagre_pallas(hidden_packed, cls_w, cls_b, bag_off, bag_cnt, label_onehot,
                 num_bags, class_count, max_bag_pad, g_tile=8):
    """hidden_packed: bf16 [B_alloc, H_pad]; cls_w: bf16 [H_pad, C_pad];
    cls_b: f32 [1, C_pad]; bag_off/bag_cnt: int32 [G_pad];
    label_onehot: f32 [G_pad, C_pad].  Returns (logits [G, C], scalar loss)."""
    b_alloc, h_pad = hidden_packed.shape
    g_pad, c_pad = label_onehot.shape
    n_tiles = g_pad // g_tile

    kernel = functools.partial(bagre_kernel, g_tile=g_tile,
                               max_bag_pad=max_bag_pad, n_cls=class_count)

    # TODO(synk): for very large B*H, keep `hidden` in HBM (memory_space=pl.ANY)
    # and manually DMA each bag's member rows instead of full VMEM residency.
    grid_spec = pltpu.PrefetchScalarGridSpec(
        num_scalar_prefetch=2,                 # bag_off, bag_cnt -> SMEM
        grid=(n_tiles,),
        in_specs=[
            pl.BlockSpec((b_alloc, h_pad), lambda t, off, cnt: (0, 0)),
            pl.BlockSpec((h_pad, c_pad),   lambda t, off, cnt: (0, 0)),
            pl.BlockSpec((1, c_pad),       lambda t, off, cnt: (0, 0)),
            pl.BlockSpec((g_tile, c_pad),  lambda t, off, cnt: (t, 0)),
        ],
        out_specs=(
            pl.BlockSpec((g_tile, c_pad),  lambda t, off, cnt: (t, 0)),
            pl.BlockSpec((g_tile, c_pad),  lambda t, off, cnt: (t, 0)),
        ),
    )

    logits_pad, loss_elems = pl.pallas_call(
        kernel,
        grid_spec=grid_spec,
        out_shape=(jax.ShapeDtypeStruct((g_pad, c_pad), jnp.float32),
                   jax.ShapeDtypeStruct((g_pad, c_pad), jnp.float32)),
        compiler_params=pltpu.CompilerParams(
            dimension_semantics=("parallel",),        # bag tiles shard across TCs
            vmem_limit_bytes=32 * 1024 * 1024),
    )(bag_off, bag_cnt, hidden_packed, cls_w, cls_b, label_onehot)

    logits = logits_pad[:num_bags, :class_count]
    # Padded rows/cols were masked in-kernel, so a plain sum / (G*C) is the mean.
    loss = loss_elems.sum() / (num_bags * class_count)
    return logits, loss


# ----------------------------------------------------------------------------
# Glue: stand-in encoder + host-side bag structures
# ----------------------------------------------------------------------------
def simple_encoder(input_ids, attention_mask, emb, enc_w, enc_b):
    """Deterministic stand-in for the injected `encoder` (plain-JAX glue)."""
    x = emb[input_ids]                                            # [B, S, E]
    mask = attention_mask[..., None].astype(jnp.float32)          # [B, S, 1]
    pooled = (x * mask).sum(1) / jnp.clip(mask.sum(1), 1.0, None)  # [B, E]
    return jnp.tanh(pooled @ enc_w + enc_b)                        # [B, H]


def build_bag_structures(bag_id_np, class_count, labels_np, g_tile=8):
    """Host glue reproducing the data-dependent Python dedup loop, plus a
    packing plan: sentences are grouped bag-by-bag at 8-aligned row offsets so
    the kernel's dynamic slices are (8,128)-tile aligned."""
    bag_id_set, bag_first_id = [], []
    for idx, bid in enumerate(bag_id_np.tolist()):
        if bid not in bag_id_set:
            bag_id_set.append(bid)
            bag_first_id.append(idx)
    num_bags = len(bag_id_set)
    B = bag_id_np.shape[0]

    offs, cnts, dest_of_src = [], [], {}
    cur = 0
    for bid in bag_id_set:
        members = np.nonzero(bag_id_np == bid)[0]
        offs.append(cur)
        cnts.append(int(members.shape[0]))
        for k, src in enumerate(members.tolist()):
            dest_of_src[src] = cur + k
        cur = _round_up(cur + int(members.shape[0]), 8)

    max_bag_pad = _round_up(max(cnts), 8)
    b_alloc = _round_up(max(cur, offs[-1] + max_bag_pad, max_bag_pad), 8)
    g_pad = _round_up(max(num_bags, g_tile), g_tile)

    bag_off = np.zeros((g_pad,), np.int32)
    bag_cnt = np.zeros((g_pad,), np.int32)
    bag_off[:num_bags] = offs
    bag_cnt[:num_bags] = cnts

    # dest row -> source sentence index (B points at an extra all-zero pad row)
    src_of_dest = np.full((b_alloc,), B, np.int32)
    for src, dst in dest_of_src.items():
        src_of_dest[dst] = src

    # one-hot labels of each bag's first sentence, padded to [G_pad, C_pad]
    c_pad = _round_up(class_count, 128)
    onehot = np.zeros((g_pad, c_pad), np.float32)
    onehot[np.arange(num_bags),
           labels_np[np.asarray(bag_first_id)]] = 1.0

    return num_bags, max_bag_pad, bag_off, bag_cnt, src_of_dest, onehot


if __name__ == "__main__":
    # Small shapes consistent with the forward pass.
    B, S, V, E, H, C = 8, 8, 50, 16, 32, 4
    G_TILE = 8

    key = jax.random.PRNGKey(0)
    k_ids, k_emb, k_ew, k_eb, k_cw, k_cb, k_lab = jax.random.split(key, 7)

    # Inputs
    input_ids = jax.random.randint(k_ids, (B, S), 0, V, dtype=jnp.int32)
    attention_mask = jnp.ones((B, S), dtype=jnp.int32)
    bag_id = np.asarray([0, 0, 1, 1, 1, 2, 2, 2], dtype=np.int32)   # 3 bags
    labels = jax.random.randint(k_lab, (B,), 0, C, dtype=jnp.int32)

    # Deterministic parameter init (PyTorch Linear-style uniform bounds).
    emb = jax.random.normal(k_emb, (V, E), dtype=jnp.float32) * 0.1
    enc_w = jax.random.uniform(k_ew, (E, H), minval=-1 / np.sqrt(E),
                               maxval=1 / np.sqrt(E), dtype=jnp.float32)
    enc_b = jax.random.uniform(k_eb, (H,), minval=-1 / np.sqrt(E),
                               maxval=1 / np.sqrt(E), dtype=jnp.float32)
    cls_w = jax.random.uniform(k_cw, (H, C), minval=-1 / np.sqrt(H),
                               maxval=1 / np.sqrt(H), dtype=jnp.float32)  # [H, C]
    cls_b = jax.random.uniform(k_cb, (1, C), minval=-1 / np.sqrt(H),
                               maxval=1 / np.sqrt(H), dtype=jnp.float32)

    # Encoder (glue) -> hidden [B, H]
    hidden = simple_encoder(input_ids, attention_mask, emb, enc_w, enc_b)

    # Host-side bag dedup / packing plan / one-hot labels (glue).
    (num_bags, max_bag_pad, bag_off, bag_cnt,
     src_of_dest, label_onehot) = build_bag_structures(bag_id, C,
                                                       np.asarray(labels), G_TILE)

    # Pad to lane/MXU-friendly shapes and pack rows bag-by-bag; bf16 operands.
    H_pad = _round_up(H, 128)
    C_pad = _round_up(C, 128)
    hidden_rows = jnp.zeros((B + 1, H_pad), jnp.float32).at[:B, :H].set(hidden)
    hidden_packed = hidden_rows[jnp.asarray(src_of_dest)].astype(jnp.bfloat16)
    w_pad = jnp.zeros((H_pad, C_pad), jnp.float32).at[:H, :C].set(cls_w)
    w_pad = w_pad.astype(jnp.bfloat16)
    b_pad = jnp.zeros((1, C_pad), jnp.float32).at[:, :C].set(cls_b)
    y_pad = jnp.asarray(label_onehot)

    # Pallas hot path: segment-mean aggregation + classifier matmul + BCE loss.
    logits, loss = bagre_pallas(hidden_packed, w_pad, b_pad,
                                jnp.asarray(bag_off), jnp.asarray(bag_cnt),
                                y_pad, num_bags, C, max_bag_pad, g_tile=G_TILE)
    loss = jax.block_until_ready(loss)

    # Pure-JAX reference (same bf16/f32 precision path).
    h32 = hidden_packed.astype(jnp.float32)
    ref_rows = []
    for g in range(num_bags):
        o, c = int(bag_off[g]), int(bag_cnt[g])
        ref_rows.append(h32[o:o + c].sum(0, keepdims=True) / float(c))
    ref_sel = jnp.concatenate(ref_rows, axis=0)                    # [G, H_pad]
    ref_logits = (jnp.dot(ref_sel.astype(jnp.bfloat16), w_pad,
                          preferred_element_type=jnp.float32) + b_pad)[:, :C]
    y = y_pad[:num_bags, :C]
    ref_loss = jnp.mean(jnp.maximum(ref_logits, 0.0) - ref_logits * y
                        + jnp.log1p(jnp.exp(-jnp.abs(ref_logits))))

    assert np.allclose(np.asarray(logits), np.asarray(ref_logits),
                       atol=1e-4, rtol=1e-4)
    assert np.allclose(float(loss), float(ref_loss), atol=1e-4, rtol=1e-4)

    print("KERNEL_OK")
</pallas_src>

<mosaic_0001>
module attributes {stable_mosaic.version = 11 : i64} {
  func.func @bagre_kernel(%arg0: i32, %arg1: memref<8xi32, #tpu.memory_space<smem>>, %arg2: memref<8xi32, #tpu.memory_space<smem>>, %arg3: memref<24x128xbf16, #tpu.memory_space<vmem>>, %arg4: memref<128x128xbf16, #tpu.memory_space<vmem>>, %arg5: memref<1x128xf32, #tpu.memory_space<vmem>>, %arg6: memref<8x128xf32, #tpu.memory_space<vmem>>, %arg7: memref<8x128xf32, #tpu.memory_space<vmem>>, %arg8: memref<8x128xf32, #tpu.memory_space<vmem>>) attributes {dimension_semantics = [#tpu.dimension_semantics<parallel>], iteration_bounds = array<i64: 1>, scalar_prefetch = 2 : i64, scratch_operands = 0 : i64, tpu.core_type = #tpu.core_type<tc>, window_params = [{pipeline_mode = #tpu.pipeline_mode<synchronous>, transform_indices = @transform_0, window_bounds = array<i64: 24, 128>}, {pipeline_mode = #tpu.pipeline_mode<synchronous>, transform_indices = @transform_1, window_bounds = array<i64: 128, 128>}, {pipeline_mode = #tpu.pipeline_mode<synchronous>, transform_indices = @transform_2, window_bounds = array<i64: 1, 128>}, {transform_indices = @transform_3, window_bounds = array<i64: 8, 128>}, {transform_indices = @transform_4, window_bounds = array<i64: 8, 128>}, {transform_indices = @transform_5, window_bounds = array<i64: 8, 128>}]} {
    %c8_i32 = arith.constant 8 : i32
    %0 = arith.muli %arg0, %c8_i32 : i32
    %c0_i32 = arith.constant 0 : i32
    %1 = arith.addi %0, %c0_i32 : i32
    %2 = arith.index_cast %1 : i32 to index
    %3 = memref.load %arg1[%2] : memref<8xi32, #tpu.memory_space<smem>>
    %4 = tpu.assume_multiple %3, 8 : i32
    %5 = arith.index_cast %1 : i32 to index
    %6 = memref.load %arg2[%5] : memref<8xi32, #tpu.memory_space<smem>>
    %7 = arith.index_cast %4 : i32 to index
    %c0 = arith.constant 0 : index
    %8 = vector.load %arg3[%7, %c0] : memref<24x128xbf16, #tpu.memory_space<vmem>>, vector<8x128xbf16>
    %9 = arith.extf %8 : vector<8x128xbf16> to vector<8x128xf32>
    %10 = tpu.iota {dimensions = array<i32: 0>} : vector<8x128xi32>
    %11 = vector.broadcast %6 : i32 to vector<8x128xi32>
    %12 = arith.cmpi slt, %10, %11 : vector<8x128xi32>
    %13 = arith.extui %12 : vector<8x128xi1> to vector<8x128xi32>
    %14 = arith.sitofp %13 : vector<8x128xi32> to vector<8x128xf32>
    %c0_i32_0 = arith.constant 0 : i32
    %15 = arith.cmpi sgt, %6, %c0_i32_0 : i32
    %16 = arith.sitofp %6 : i32 to f32
    %cst = arith.constant 1.000000e+00 : f32
    %17 = arith.divf %cst, %16 : f32
    %cst_1 = arith.constant 0.000000e+00 : f32
    %18 = arith.select %15, %17, %cst_1 : f32
    %19 = arith.mulf %9, %14 : vector<8x128xf32>
    %cst_2 = arith.constant dense<0.000000e+00> : vector<128xf32>
    %20 = vector.multi_reduction <add>, %19, %cst_2 [0] : vector<8x128xf32> to vector<128xf32>
    %21 = vector.shape_cast %20 : vector<128xf32> to vector<1x128xf32>
    %22 = vector.broadcast %18 : f32 to vector<1x128xf32>
    %23 = arith.mulf %21, %22 : vector<1x128xf32>
    %c0_i32_3 = arith.constant 0 : i32
    %24 = arith.cmpi sgt, %6, %c0_i32_3 : i32
    %cst_4 = arith.constant 1.000000e+00 : f32
    %cst_5 = arith.constant 0.000000e+00 : f32
    %25 = arith.select %24, %cst_4, %cst_5 : f32
    %cst_6 = arith.constant 1.000000e+00 : f32
    %26 = vector.broadcast %cst_6 : f32 to vector<1x128xf32>
    %27 = vector.broadcast %25 : f32 to vector<1x128xf32>
    %28 = arith.mulf %27, %26 : vector<1x128xf32>
    %c8_i32_7 = arith.constant 8 : i32
    %29 = arith.muli %arg0, %c8_i32_7 : i32
    %c1_i32 = arith.constant 1 : i32
    %30 = arith.addi %29, %c1_i32 : i32
    %31 = arith.index_cast %30 : i32 to index
    %32 = memref.load %arg1[%31] : memref<8xi32, #tpu.memory_space<smem>>
    %33 = tpu.assume_multiple %32, 8 : i32
    %34 = arith.index_cast %30 : i32 to index
    %35 = memref.load %arg2[%34] : memref<8xi32, #tpu.memory_space<smem>>
    %36 = arith.index_cast %33 : i32 to index
    %c0_8 = arith.constant 0 : index
    %37 = vector.load %arg3[%36, %c0_8] : memref<24x128xbf16, #tpu.memory_space<vmem>>, vector<8x128xbf16>
    %38 = arith.extf %37 : vector<8x128xbf16> to vector<8x128xf32>
    %39 = tpu.iota {dimensions = array<i32: 0>} : vector<8x128xi32>
    %40 = vector.broadcast %35 : i32 to vector<8x128xi32>
    %41 = arith.cmpi slt, %39, %40 : vector<8x128xi32>
    %42 = arith.extui %41 : vector<8x128xi1> to vector<8x128xi32>
    %43 = arith.sitofp %42 : vector<8x128xi32> to vector<8x128xf32>
    %c0_i32_9 = arith.constant 0 : i32
    %44 = arith.cmpi sgt, %35, %c0_i32_9 : i32
    %45 = arith.sitofp %35 : i32 to f32
    %cst_10 = arith.constant 1.000000e+00 : f32
    %46 = arith.divf %cst_10, %45 : f32
    %cst_11 = arith.constant 0.000000e+00 : f32
    %47 = arith.select %44, %46, %cst_11 : f32
    %48 = arith.mulf %38, %43 : vector<8x128xf32>
    %cst_12 = arith.constant dense<0.000000e+00> : vector<128xf32>
    %49 = vector.multi_reduction <add>, %48, %cst_12 [0] : vector<8x128xf32> to vector<128xf32>
    %50 = vector.shape_cast %49 : vector<128xf32> to vector<1x128xf32>
    %51 = vector.broadcast %47 : f32 to vector<1x128xf32>
    %52 = arith.mulf %50, %51 : vector<1x128xf32>
    %c0_i32_13 = arith.constant 0 : i32
    %53 = arith.cmpi sgt, %35, %c0_i32_13 : i32
    %cst_14 = arith.constant 1.000000e+00 : f32
    %cst_15 = arith.constant 0.000000e+00 : f32
    %54 = arith.select %53, %cst_14, %cst_15 : f32
    %cst_16 = arith.constant 1.000000e+00 : f32
    %55 = vector.broadcast %cst_16 : f32 to vector<1x128xf32>
    %56 = vector.broadcast %54 : f32 to vector<1x128xf32>
    %57 = arith.mulf %56, %55 : vector<1x128xf32>
    %c8_i32_17 = arith.constant 8 : i32
    %58 = arith.muli %arg0, %c8_i32_17 : i32
    %c2_i32 = arith.constant 2 : i32
    %59 = arith.addi %58, %c2_i32 : i32
    %60 = arith.index_cast %59 : i32 to index
    %61 = memref.load %arg1[%60] : memref<8xi32, #tpu.memory_space<smem>>
    %62 = tpu.assume_multiple %61, 8 : i32
    %63 = arith.index_cast %59 : i32 to index
    %64 = memref.load %arg2[%63] : memref<8xi32, #tpu.memory_space<smem>>
    %65 = arith.index_cast %62 : i32 to index
    %c0_18 = arith.constant 0 : index
    %66 = vector.load %arg3[%65, %c0_18] : memref<24x128xbf16, #tpu.memory_space<vmem>>, vector<8x128xbf16>
    %67 = arith.extf %66 : vector<8x128xbf16> to vector<8x128xf32>
    %68 = tpu.iota {dimensions = array<i32: 0>} : vector<8x128xi32>
    %69 = vector.broadcast %64 : i32 to vector<8x128xi32>
    %70 = arith.cmpi slt, %68, %69 : vector<8x128xi32>
    %71 = arith.extui %70 : vector<8x128xi1> to vector<8x128xi32>
    %72 = arith.sitofp %71 : vector<8x128xi32> to vector<8x128xf32>
    %c0_i32_19 = arith.constant 0 : i32
    %73 = arith.cmpi sgt, %64, %c0_i32_19 : i32
    %74 = arith.sitofp %64 : i32 to f32
    %cst_20 = arith.constant 1.000000e+00 : f32
    %75 = arith.divf %cst_20, %74 : f32
    %cst_21 = arith.constant 0.000000e+00 : f32
    %76 = arith.select %73, %75, %cst_21 : f32
    %77 = arith.mulf %67, %72 : vector<8x128xf32>
    %cst_22 = arith.constant dense<0.000000e+00> : vector<128xf32>
    %78 = vector.multi_reduction <add>, %77, %cst_22 [0] : vector<8x128xf32> to vector<128xf32>
    %79 = vector.shape_cast %78 : vector<128xf32> to vector<1x128xf32>
    %80 = vector.broadcast %76 : f32 to vector<1x128xf32>
    %81 = arith.mulf %79, %80 : vector<1x128xf32>
    %c0_i32_23 = arith.constant 0 : i32
    %82 = arith.cmpi sgt, %64, %c0_i32_23 : i32
    %cst_24 = arith.constant 1.000000e+00 : f32
    %cst_25 = arith.constant 0.000000e+00 : f32
    %83 = arith.select %82, %cst_24, %cst_25 : f32
    %cst_26 = arith.constant 1.000000e+00 : f32
    %84 = vector.broadcast %cst_26 : f32 to vector<1x128xf32>
    %85 = vector.broadcast %83 : f32 to vector<1x128xf32>
    %86 = arith.mulf %85, %84 : vector<1x128xf32>
    %c8_i32_27 = arith.constant 8 : i32
    %87 = arith.muli %arg0, %c8_i32_27 : i32
    %c3_i32 = arith.constant 3 : i32
    %88 = arith.addi %87, %c3_i32 : i32
    %89 = arith.index_cast %88 : i32 to index
    %90 = memref.load %arg1[%89] : memref<8xi32, #tpu.memory_space<smem>>
    %91 = tpu.assume_multiple %90, 8 : i32
    %92 = arith.index_cast %88 : i32 to index
    %93 = memref.load %arg2[%92] : memref<8xi32, #tpu.memory_space<smem>>
    %94 = arith.index_cast %91 : i32 to index
    %c0_28 = arith.constant 0 : index
    %95 = vector.load %arg3[%94, %c0_28] : memref<24x128xbf16, #tpu.memory_space<vmem>>, vector<8x128xbf16>
    %96 = arith.extf %95 : vector<8x128xbf16> to vector<8x128xf32>
    %97 = tpu.iota {dimensions = array<i32: 0>} : vector<8x128xi32>
    %98 = vector.broadcast %93 : i32 to vector<8x128xi32>
    %99 = arith.cmpi slt, %97, %98 : vector<8x128xi32>
    %100 = arith.extui %99 : vector<8x128xi1> to vector<8x128xi32>
    %101 = arith.sitofp %100 : vector<8x128xi32> to vector<8x128xf32>
    %c0_i32_29 = arith.constant 0 : i32
    %102 = arith.cmpi sgt, %93, %c0_i32_29 : i32
    %103 = arith.sitofp %93 : i32 to f32
    %cst_30 = arith.constant 1.000000e+00 : f32
    %104 = arith.divf %cst_30, %103 : f32
    %cst_31 = arith.constant 0.000000e+00 : f32
    %105 = arith.select %102, %104, %cst_31 : f32
    %106 = arith.mulf %96, %101 : vector<8x128xf32>
    %cst_32 = arith.constant dense<0.000000e+00> : vector<128xf32>
    %107 = vector.multi_reduction <add>, %106, %cst_32 [0] : vector<8x128xf32> to vector<128xf32>
    %108 = vector.shape_cast %107 : vector<128xf32> to vector<1x128xf32>
    %109 = vector.broadcast %105 : f32 to vector<1x128xf32>
    %110 = arith.mulf %108, %109 : vector<1x128xf32>
    %c0_i32_33 = arith.constant 0 : i32
    %111 = arith.cmpi sgt, %93, %c0_i32_33 : i32
    %cst_34 = arith.constant 1.000000e+00 : f32
    %cst_35 = arith.constant 0.000000e+00 : f32
    %112 = arith.select %111, %cst_34, %cst_35 : f32
    %cst_36 = arith.constant 1.000000e+00 : f32
    %113 = vector.broadcast %cst_36 : f32 to vector<1x128xf32>
    %114 = vector.broadcast %112 : f32 to vector<1x128xf32>
    %115 = arith.mulf %114, %113 : vector<1x128xf32>
    %c8_i32_37 = arith.constant 8 : i32
    %116 = arith.muli %arg0, %c8_i32_37 : i32
    %c4_i32 = arith.constant 4 : i32
    %117 = arith.addi %116, %c4_i32 : i32
    %118 = arith.index_cast %117 : i32 to index
    %119 = memref.load %arg1[%118] : memref<8xi32, #tpu.memory_space<smem>>
    %120 = tpu.assume_multiple %119, 8 : i32
    %121 = arith.index_cast %117 : i32 to index
    %122 = memref.load %arg2[%121] : memref<8xi32, #tpu.memory_space<smem>>
    %123 = arith.index_cast %120 : i32 to index
    %c0_38 = arith.constant 0 : index
    %124 = vector.load %arg3[%123, %c0_38] : memref<24x128xbf16, #tpu.memory_space<vmem>>, vector<8x128xbf16>
    %125 = arith.extf %124 : vector<8x128xbf16> to vector<8x128xf32>
    %126 = tpu.iota {dimensions = array<i32: 0>} : vector<8x128xi32>
    %127 = vector.broadcast %122 : i32 to vector<8x128xi32>
    %128 = arith.cmpi slt, %126, %127 : vector<8x128xi32>
    %129 = arith.extui %128 : vector<8x128xi1> to vector<8x128xi32>
    %130 = arith.sitofp %129 : vector<8x128xi32> to vector<8x128xf32>
    %c0_i32_39 = arith.constant 0 : i32
    %131 = arith.cmpi sgt, %122, %c0_i32_39 : i32
    %132 = arith.sitofp %122 : i32 to f32
    %cst_40 = arith.constant 1.000000e+00 : f32
    %133 = arith.divf %cst_40, %132 : f32
    %cst_41 = arith.constant 0.000000e+00 : f32
    %134 = arith.select %131, %133, %cst_41 : f32
    %135 = arith.mulf %125, %130 : vector<8x128xf32>
    %cst_42 = arith.constant dense<0.000000e+00> : vector<128xf32>
    %136 = vector.multi_reduction <add>, %135, %cst_42 [0] : vector<8x128xf32> to vector<128xf32>
    %137 = vector.shape_cast %136 : vector<128xf32> to vector<1x128xf32>
    %138 = vector.broadcast %134 : f32 to vector<1x128xf32>
    %139 = arith.mulf %137, %138 : vector<1x128xf32>
    %c0_i32_43 = arith.constant 0 : i32
    %140 = arith.cmpi sgt, %122, %c0_i32_43 : i32
    %cst_44 = arith.constant 1.000000e+00 : f32
    %cst_45 = arith.constant 0.000000e+00 : f32
    %141 = arith.select %140, %cst_44, %cst_45 : f32
    %cst_46 = arith.constant 1.000000e+00 : f32
    %142 = vector.broadcast %cst_46 : f32 to vector<1x128xf32>
    %143 = vector.broadcast %141 : f32 to vector<1x128xf32>
    %144 = arith.mulf %143, %142 : vector<1x128xf32>
    %c8_i32_47 = arith.constant 8 : i32
    %145 = arith.muli %arg0, %c8_i32_47 : i32
    %c5_i32 = arith.constant 5 : i32
    %146 = arith.addi %145, %c5_i32 : i32
    %147 = arith.index_cast %146 : i32 to index
    %148 = memref.load %arg1[%147] : memref<8xi32, #tpu.memory_space<smem>>
    %149 = tpu.assume_multiple %148, 8 : i32
    %150 = arith.index_cast %146 : i32 to index
    %151 = memref.load %arg2[%150] : memref<8xi32, #tpu.memory_space<smem>>
    %152 = arith.index_cast %149 : i32 to index
    %c0_48 = arith.constant 0 : index
    %153 = vector.load %arg3[%152, %c0_48] : memref<24x128xbf16, #tpu.memory_space<vmem>>, vector<8x128xbf16>
    %154 = arith.extf %153 : vector<8x128xbf16> to vector<8x128xf32>
    %155 = tpu.iota {dimensions = array<i32: 0>} : vector<8x128xi32>
    %156 = vector.broadcast %151 : i32 to vector<8x128xi32>
    %157 = arith.cmpi slt, %155, %156 : vector<8x128xi32>
    %158 = arith.extui %157 : vector<8x128xi1> to vector<8x128xi32>
    %159 = arith.sitofp %158 : vector<8x128xi32> to vector<8x128xf32>
    %c0_i32_49 = arith.constant 0 : i32
    %160 = arith.cmpi sgt, %151, %c0_i32_49 : i32
    %161 = arith.sitofp %151 : i32 to f32
    %cst_50 = arith.constant 1.000000e+00 : f32
    %162 = arith.divf %cst_50, %161 : f32
    %cst_51 = arith.constant 0.000000e+00 : f32
    %163 = arith.select %160, %162, %cst_51 : f32
    %164 = arith.mulf %154, %159 : vector<8x128xf32>
    %cst_52 = arith.constant dense<0.000000e+00> : vector<128xf32>
    %165 = vector.multi_reduction <add>, %164, %cst_52 [0] : vector<8x128xf32> to vector<128xf32>
    %166 = vector.shape_cast %165 : vector<128xf32> to vector<1x128xf32>
    %167 = vector.broadcast %163 : f32 to vector<1x128xf32>
    %168 = arith.mulf %166, %167 : vector<1x128xf32>
    %c0_i32_53 = arith.constant 0 : i32
    %169 = arith.cmpi sgt, %151, %c0_i32_53 : i32
    %cst_54 = arith.constant 1.000000e+00 : f32
    %cst_55 = arith.constant 0.000000e+00 : f32
    %170 = arith.select %169, %cst_54, %cst_55 : f32
    %cst_56 = arith.constant 1.000000e+00 : f32
    %171 = vector.broadcast %cst_56 : f32 to vector<1x128xf32>
    %172 = vector.broadcast %170 : f32 to vector<1x128xf32>
    %173 = arith.mulf %172, %171 : vector<1x128xf32>
    %c8_i32_57 = arith.constant 8 : i32
    %174 = arith.muli %arg0, %c8_i32_57 : i32
    %c6_i32 = arith.constant 6 : i32
    %175 = arith.addi %174, %c6_i32 : i32
    %176 = arith.index_cast %175 : i32 to index
    %177 = memref.load %arg1[%176] : memref<8xi32, #tpu.memory_space<smem>>
    %178 = tpu.assume_multiple %177, 8 : i32
    %179 = arith.index_cast %175 : i32 to index
    %180 = memref.load %arg2[%179] : memref<8xi32, #tpu.memory_space<smem>>
    %181 = arith.index_cast %178 : i32 to index
    %c0_58 = arith.constant 0 : index
    %182 = vector.load %arg3[%181, %c0_58] : memref<24x128xbf16, #tpu.memory_space<vmem>>, vector<8x128xbf16>
    %183 = arith.extf %182 : vector<8x128xbf16> to vector<8x128xf32>
    %184 = tpu.iota {dimensions = array<i32: 0>} : vector<8x128xi32>
    %185 = vector.broadcast %180 : i32 to vector<8x128xi32>
    %186 = arith.cmpi slt, %184, %185 : vector<8x128xi32>
    %187 = arith.extui %186 : vector<8x128xi1> to vector<8x128xi32>
    %188 = arith.sitofp %187 : vector<8x128xi32> to vector<8x128xf32>
    %c0_i32_59 = arith.constant 0 : i32
    %189 = arith.cmpi sgt, %180, %c0_i32_59 : i32
    %190 = arith.sitofp %180 : i32 to f32
    %cst_60 = arith.constant 1.000000e+00 : f32
    %191 = arith.divf %cst_60, %190 : f32
    %cst_61 = arith.constant 0.000000e+00 : f32
    %192 = arith.select %189, %191, %cst_61 : f32
    %193 = arith.mulf %183, %188 : vector<8x128xf32>
    %cst_62 = arith.constant dense<0.000000e+00> : vector<128xf32>
    %194 = vector.multi_reduction <add>, %193, %cst_62 [0] : vector<8x128xf32> to vector<128xf32>
    %195 = vector.shape_cast %194 : vector<128xf32> to vector<1x128xf32>
    %196 = vector.broadcast %192 : f32 to vector<1x128xf32>
    %197 = arith.mulf %195, %196 : vector<1x128xf32>
    %c0_i32_63 = arith.constant 0 : i32
    %198 = arith.cmpi sgt, %180, %c0_i32_63 : i32
    %cst_64 = arith.constant 1.000000e+00 : f32
    %cst_65 = arith.constant 0.000000e+00 : f32
    %199 = arith.select %198, %cst_64, %cst_65 : f32
    %cst_66 = arith.constant 1.000000e+00 : f32
    %200 = vector.broadcast %cst_66 : f32 to vector<1x128xf32>
    %201 = vector.broadcast %199 : f32 to vector<1x128xf32>
    %202 = arith.mulf %201, %200 : vector<1x128xf32>
    %c8_i32_67 = arith.constant 8 : i32
    %203 = arith.muli %arg0, %c8_i32_67 : i32
    %c7_i32 = arith.constant 7 : i32
    %204 = arith.addi %203, %c7_i32 : i32
    %205 = arith.index_cast %204 : i32 to index
    %206 = memref.load %arg1[%205] : memref<8xi32, #tpu.memory_space<smem>>
    %207 = tpu.assume_multiple %206, 8 : i32
    %208 = arith.index_cast %204 : i32 to index
    %209 = memref.load %arg2[%208] : memref<8xi32, #tpu.memory_space<smem>>
    %210 = arith.index_cast %207 : i32 to index
    %c0_68 = arith.constant 0 : index
    %211 = vector.load %arg3[%210, %c0_68] : memref<24x128xbf16, #tpu.memory_space<vmem>>, vector<8x128xbf16>
    %212 = arith.extf %211 : vector<8x128xbf16> to vector<8x128xf32>
    %213 = tpu.iota {dimensions = array<i32: 0>} : vector<8x128xi32>
    %214 = vector.broadcast %209 : i32 to vector<8x128xi32>
    %215 = arith.cmpi slt, %213, %214 : vector<8x128xi32>
    %216 = arith.extui %215 : vector<8x128xi1> to vector<8x128xi32>
    %217 = arith.sitofp %216 : vector<8x128xi32> to vector<8x128xf32>
    %c0_i32_69 = arith.constant 0 : i32
    %218 = arith.cmpi sgt, %209, %c0_i32_69 : i32
    %219 = arith.sitofp %209 : i32 to f32
    %cst_70 = arith.constant 1.000000e+00 : f32
    %220 = arith.divf %cst_70, %219 : f32
    %cst_71 = arith.constant 0.000000e+00 : f32
    %221 = arith.select %218, %220, %cst_71 : f32
    %222 = arith.mulf %212, %217 : vector<8x128xf32>
    %cst_72 = arith.constant dense<0.000000e+00> : vector<128xf32>
    %223 = vector.multi_reduction <add>, %222, %cst_72 [0] : vector<8x128xf32> to vector<128xf32>
    %224 = vector.shape_cast %223 : vector<128xf32> to vector<1x128xf32>
    %225 = vector.broadcast %221 : f32 to vector<1x128xf32>
    %226 = arith.mulf %224, %225 : vector<1x128xf32>
    %c0_i32_73 = arith.constant 0 : i32
    %227 = arith.cmpi sgt, %209, %c0_i32_73 : i32
    %cst_74 = arith.constant 1.000000e+00 : f32
    %cst_75 = arith.constant 0.000000e+00 : f32
    %228 = arith.select %227, %cst_74, %cst_75 : f32
    %cst_76 = arith.constant 1.000000e+00 : f32
    %229 = vector.broadcast %cst_76 : f32 to vector<1x128xf32>
    %230 = vector.broadcast %228 : f32 to vector<1x128xf32>
    %231 = arith.mulf %230, %229 : vector<1x128xf32>
    %232 = tpu.concatenate %23, %52, %81, %110, %139, %168, %197, %226 in 0 : vector<1x128xf32>, vector<1x128xf32>, vector<1x128xf32>, vector<1x128xf32>, vector<1x128xf32>, vector<1x128xf32>, vector<1x128xf32>, vector<1x128xf32> -> vector<8x128xf32>
    %233 = tpu.concatenate %28, %57, %86, %115, %144, %173, %202, %231 in 0 : vector<1x128xf32>, vector<1x128xf32>, vector<1x128xf32>, vector<1x128xf32>, vector<1x128xf32>, vector<1x128xf32>, vector<1x128xf32>, vector<1x128xf32> -> vector<8x128xf32>
    %234 = arith.truncf %232 : vector<8x128xf32> to vector<8x128xbf16>
    %c0_77 = arith.constant 0 : index
    %c0_78 = arith.constant 0 : index
    %235 = vector.load %arg4[%c0_77, %c0_78] : memref<128x128xbf16, #tpu.memory_space<vmem>>, vector<128x128xbf16>
    %cst_79 = arith.constant dense<0.000000e+00> : vector<8x128xf32>
    %236 = tpu.matmul %234, %235, %cst_79 {dimension_numbers = #tpu.dot_dimension_numbers<[1], [0], [0], [1], [0, 0, 1, 1], [], []>} : vector<8x128xbf16>, vector<128x128xbf16>, vector<8x128xf32> -> vector<8x128xf32>
    %c0_80 = arith.constant 0 : index
    %c0_81 = arith.constant 0 : index
    %237 = vector.load %arg5[%c0_80, %c0_81] : memref<1x128xf32, #tpu.memory_space<vmem>>, vector<1x128xf32>
    %238 = vector.broadcast %237 : vector<1x128xf32> to vector<8x128xf32>
    %239 = arith.addf %236, %238 : vector<8x128xf32>
    %c0_82 = arith.constant 0 : index
    %c0_83 = arith.constant 0 : index
    %240 = vector.load %arg7[%c0_82, %c0_83] : memref<8x128xf32, #tpu.memory_space<vmem>>, vector<8x128xf32>
    tpu.vector_store %arg7[%c0_82, %c0_83], %239 {strides = array<i32>} : memref<8x128xf32, #tpu.memory_space<vmem>>, vector<8x128xf32>,
    %c0_84 = arith.constant 0 : index
    %c0_85 = arith.constant 0 : index
    %241 = vector.load %arg6[%c0_84, %c0_85] : memref<8x128xf32, #tpu.memory_space<vmem>>, vector<8x128xf32>
    %cst_86 = arith.constant 0.000000e+00 : f32
    %242 = vector.broadcast %cst_86 : f32 to vector<8x128xf32>
    %243 = arith.maximumf %239, %242 : vector<8x128xf32>
    %244 = arith.mulf %239, %241 : vector<8x128xf32>
    %245 = arith.subf %243, %244 : vector<8x128xf32>
    %246 = math.absf %239 : vector<8x128xf32>
    %cst_87 = arith.constant 0.000000e+00 : f32
    %247 = vector.broadcast %cst_87 : f32 to vector<8x128xf32>
    %248 = arith.subf %247, %246 : vector<8x128xf32>
    %249 = math.exp %248 : vector<8x128xf32>
    %250 = math.log1p %249 : vector<8x128xf32>
    %251 = arith.addf %245, %250 : vector<8x128xf32>
    %252 = tpu.iota {dimensions = array<i32: 1>} : vector<8x128xi32>
    %c4_i32_88 = arith.constant 4 : i32
    %253 = vector.broadcast %c4_i32_88 : i32 to vector<8x128xi32>
    %254 = arith.cmpi slt, %252, %253 : vector<8x128xi32>
    %255 = arith.extui %254 : vector<8x128xi1> to vector<8x128xi32>
    %256 = arith.sitofp %255 : vector<8x128xi32> to vector<8x128xf32>
    %257 = arith.mulf %251, %233 : vector<8x128xf32>
    %258 = arith.mulf %257, %256 : vector<8x128xf32>
    %c0_89 = arith.constant 0 : index
    %c0_90 = arith.constant 0 : index
    %259 = vector.load %arg8[%c0_89, %c0_90] : memref<8x128xf32, #tpu.memory_space<vmem>>, vector<8x128xf32>
    tpu.vector_store %arg8[%c0_89, %c0_90], %258 {strides = array<i32>} : memref<8x128xf32, #tpu.memory_space<vmem>>, vector<8x128xf32>,
    return
  }
  func.func @transform_0(%arg0: i32, %arg1: memref<8xi32, #tpu.memory_space<smem>>, %arg2: memref<8xi32, #tpu.memory_space<smem>>) -> (i32, i32) {
    %c0_i32 = arith.constant 0 : i32
    %c0_i32_0 = arith.constant 0 : i32
    %c0_i32_1 = arith.constant 0 : i32
    return %c0_i32, %c0_i32_0 : i32, i32
  }
  func.func @transform_1(%arg0: i32, %arg1: memref<8xi32, #tpu.memory_space<smem>>, %arg2: memref<8xi32, #tpu.memory_space<smem>>) -> (i32, i32) {
    %c0_i32 = arith.constant 0 : i32
    %c0_i32_0 = arith.constant 0 : i32
    %c0_i32_1 = arith.constant 0 : i32
    return %c0_i32, %c0_i32_0 : i32, i32
  }
  func.func @transform_2(%arg0: i32, %arg1: memref<8xi32, #tpu.memory_space<smem>>, %arg2: memref<8xi32, #tpu.memory_space<smem>>) -> (i32, i32) {
    %c0_i32 = arith.constant 0 : i32
    %c0_i32_0 = arith.constant 0 : i32
    %c0_i32_1 = arith.constant 0 : i32
    return %c0_i32, %c0_i32_0 : i32, i32
  }
  func.func @transform_3(%arg0: i32, %arg1: memref<8xi32, #tpu.memory_space<smem>>, %arg2: memref<8xi32, #tpu.memory_space<smem>>) -> (i32, i32) {
    %c0_i32 = arith.constant 0 : i32
    %c0_i32_0 = arith.constant 0 : i32
    return %arg0, %c0_i32 : i32, i32
  }
  func.func @transform_4(%arg0: i32, %arg1: memref<8xi32, #tpu.memory_space<smem>>, %arg2: memref<8xi32, #tpu.memory_space<smem>>) -> (i32, i32) {
    %c0_i32 = arith.constant 0 : i32
    %c0_i32_0 = arith.constant 0 : i32
    return %arg0, %c0_i32 : i32, i32
  }
  func.func @transform_5(%arg0: i32, %arg1: memref<8xi32, #tpu.memory_space<smem>>, %arg2: memref<8xi32, #tpu.memory_space<smem>>) -> (i32, i32) {
    %c0_i32 = arith.constant 0 : i32
    %c0_i32_0 = arith.constant 0 : i32
    return %arg0, %c0_i32 : i32, i32
  }
}

</mosaic_0001>

<llo_original>
// kernel: tpu_custom_call.1
$region0: #{tpu_custom_call.1}
  #allocation0 [shape = 'u32[]', space=smem, size = 0x4, offset = 0x4, fixed_abs, tag = 'smem constant byte address 0x4 - core index']
  #allocation1 [shape = 'u32[144,128]{1,0:T(1,128)}', space=vmem, size = 0x12000, scoped, tag = 'internal scratch']
  #allocation2 [shape = 's32[1]{0}', space=sflag, size = 0x4, scoped, tag = 'scoped memory for tpu_custom_call.1']
  #allocation3 [shape = 'u8[512]{0}', space=smem, size = 0x200, scoped, tag = 'prefetched SMEM operand 0']
  #allocation4 [shape = 'u8[512]{0}', space=smem, size = 0x200, scoped, tag = 'prefetched SMEM operand 1']
  %s0 = inlined_call_operand.hbm [shape: s32[8], index: 0, kind: input, shape index: {}]
  %s1 = inlined_call_operand.vmem [shape: s32[8], index: 1, kind: input, shape index: {}]
  %s2 = inlined_call_operand.hbm [shape: bf16[24,128], index: 2, kind: input, shape index: {}]
  %s3 = inlined_call_operand.hbm [shape: bf16[128,128], index: 3, kind: input, shape index: {}]
  %s4 = inlined_call_operand.vmem [shape: f32[1,128], index: 4, kind: input, shape index: {}]
  %s5 = inlined_call_operand.vmem [shape: f32[8,128], index: 5, kind: input, shape index: {}]
  %s6 = inlined_call_operand.hbm [shape: f32[8,128], index: 6, kind: output, shape index: {0}]
  %s7 = inlined_call_operand.hbm [shape: f32[8,128], index: 7, kind: output, shape index: {1}]
  %8 = xla_tuple %s6, %s7
  %s9 = sld [smem:[#allocation0]]
  $region42: #{tpu_custom_call.1} parent=0
    _
  %s11 = ssub.s32 1, %s9
  %s12 = scalar_select 0, %s11, %s9
  %14 = dma.hbm_to_smem %s0, 16, [#allocation3], [#allocation2]
  %s15 = sshll.u32 %s1, 4
  %s16 = int_to_ptr.vmem [resolvable:$true] %s15
  %18 = dma.vmem_to_smem %s16, 16, [#allocation4], [#allocation2]
  %19 = dma.done [#allocation2], 32
  %20 = sfence
  $region1: #{tpu_custom_call.1} parent=0
    #allocation5 [shape = 'u8[6144]{0}', space=vmem, size = 0x1800, scoped, tag = 'input window, operand 2, single buffered']
    #allocation6 [shape = 's32[1]{0}', space=sflag, size = 0x4, scoped, tag = 'scoped memory for tpu_custom_call.1']
    #allocation7 [shape = 's32[1]{0}', space=sflag, size = 0x4, scoped, tag = 'scoped memory for tpu_custom_call.1']
    #allocation8 [shape = 'u8[32768]{0}', space=vmem, size = 0x8000, scoped, tag = 'input window, operand 3, single buffered']
    #allocation9 [shape = 's32[1]{0}', space=sflag, size = 0x4, scoped, tag = 'scoped memory for tpu_custom_call.1']
    #allocation10 [shape = 'u8[4096]{0}', space=vmem, size = 0x1000, scoped, tag = 'output window, operand 0, single buffered']
    #allocation11 [shape = 'u8[4096]{0}', space=vmem, size = 0x1000, scoped, tag = 'output window, operand 1, single buffered']
    #allocation12 [shape = 's32[1]{0}', space=sflag, size = 0x4, scoped, tag = 'scoped memory for tpu_custom_call.1']
    %21 = vsyncpa [#allocation6], 0
    %22 = vsyncpa [#allocation9], 0
    %23 = vsyncpa [#allocation7], 0
    %24 = vsyncpa [#allocation12], 0
    // Predicated region
    $region2: #{tpu_custom_call.1} parent=1 // pred_check
      _
    $region3: #{tpu_custom_call.1} parent=1 // pred_check_branch
      %26 = sbr.rel (0) target = $region5
    $region4: #{tpu_custom_call.1} parent=1 // pred_region
      %s28 = ssub.s32 192, 192
      %29 = vsyncadd [#allocation6], %s28
      %s30 = sshll.u32 [#allocation5], 4
      %s31 = int_to_ptr.vmem [resolvable:$true] %s30
      %36 = dma.hbm_to_vmem [thread:$0]  %s2, 192, %s31, [#allocation6], 64, 64, 4
    $region5: #{tpu_custom_call.1} parent=1 // pred_fallthru
      _
    // Predicated region
    $region6: #{tpu_custom_call.1} parent=1 // pred_check
      _
    $region7: #{tpu_custom_call.1} parent=1 // pred_check_branch
      %38 = sbr.rel (0) target = $region9
    $region8: #{tpu_custom_call.1} parent=1 // pred_region
      %s40 = ssub.s32 1024, 1024
      %41 = vsyncadd [#allocation9], %s40
      %s42 = sshll.u32 [#allocation8], 4
      %s43 = int_to_ptr.vmem [resolvable:$true] %s42
      %48 = dma.hbm_to_vmem [thread:$0]  %s3, 1024, %s43, [#allocation9], 64, 64, 4
    $region9: #{tpu_custom_call.1} parent=1 // pred_fallthru
      _
    // Predicated region
    $region10: #{tpu_custom_call.1} parent=1 // pred_check
      _
    $region11: #{tpu_custom_call.1} parent=1 // pred_check_branch
      %50 = sbr.rel (0) target = $region13
    $region12: #{tpu_custom_call.1} parent=1 // pred_region
      _
    $region13: #{tpu_custom_call.1} parent=1 // pred_fallthru
      _
    // Predicated region
    $region14: #{tpu_custom_call.1} parent=1 // pred_check
      _
    $region15: #{tpu_custom_call.1} parent=1 // pred_check_branch
      %52 = sbr.rel (0) target = $region17
    $region16: #{tpu_custom_call.1} parent=1 // pred_region
      _
    $region17: #{tpu_custom_call.1} parent=1 // pred_fallthru
      _
    // Predicated region
    $region18: #{tpu_custom_call.1} parent=1 // pred_check
      _
    $region19: #{tpu_custom_call.1} parent=1 // pred_check_branch
      %54 = sbr.rel (0) target = $region21
    $region20: #{tpu_custom_call.1} parent=1 // pred_region
      %55 = dma.done [#allocation6], 192
    $region21: #{tpu_custom_call.1} parent=1 // pred_fallthru
      _
    // Predicated region
    $region22: #{tpu_custom_call.1} parent=1 // pred_check
      _
    $region23: #{tpu_custom_call.1} parent=1 // pred_check_branch
      %57 = sbr.rel (0) target = $region25
    $region24: #{tpu_custom_call.1} parent=1 // pred_region
      %58 = dma.done [#allocation9], 1024
    $region25: #{tpu_custom_call.1} parent=1 // pred_fallthru
      _
    %s60 = smul.u32 0, 8
    %s61 = sld [smem:[#allocation3 + %s60]]
    %s62 = sld [smem:[#allocation4 + %s60]]
    %s63 = sshra.s32 %s61, 3
    %s64 = sand.u32 %s61, 7
    %s65 = smul.addr %s63, 4
    %s66 = scalar_lea.vmem [#allocation5], %s65
    %v67 = vld [vmem:[%s66] sm:$0xf]
    %v68 = vunpack.c.l.bf16 %v67
    %v69 = vlaneseq
    %v70 = vshrl.u32 %v69, 7
    %v71 = vstv %s62
    %vm72 = vcmp.lt.s32.totalorder %v70, %v71
    %v73 = vsel %vm72, 1, 0
    %v74 = vcvt.s32.f32 %v73
    %p75 = scmp.gt.s32.totalorder %s62, 0
    %s76 = scvt.s32.f32 %s62
    %v77 = vstv %s76
    %v78 = vrcp.pop %v77
    %s79 = vtos %v78
    %s80 = scalar_select %p75, %s79, 0.0
    %v81 = vmul.f32 %v68, %v74
    %v82 = vrot.slane %v81, 4
    %v83 = vadd.f32 %v81, %v82
    %v84 = vrot.slane %v83, 2
    %v85 = vadd.f32 %v83, %v84
    %v86 = vrot.slane %v85, 1
    %v87 = vadd.f32 %v85, %v86
    %v88 = vstv %s80
    %v89 = vmul.f32 %v87, %v88
    %s90 = scalar_select %p75, 1.0, 0.0
    %v91 = vstv %s90
    %s92 = sadd.s32 %s60, 1
    %s93 = sld [smem:[#allocation3 + %s92]]
    %s94 = sld [smem:[#allocation4 + %s92]]
    %s95 = sshra.s32 %s93, 3
    %s96 = sand.u32 %s93, 7
    %s97 = smul.addr %s95, 4
    %s98 = scalar_lea.vmem [#allocation5], %s97
    %v99 = vld [vmem:[%s98] sm:$0xf]
    %v100 = vunpack.c.l.bf16 %v99
    %v101 = vstv %s94
    %vm102 = vcmp.lt.s32.totalorder %v70, %v101
    %v103 = vsel %vm102, 1, 0
    %v104 = vcvt.s32.f32 %v103
    %p105 = scmp.gt.s32.totalorder %s94, 0
    %s106 = scvt.s32.f32 %s94
    %v107 = vstv %s106
    %v108 = vrcp.pop %v107
    %s109 = vtos %v108
    %s110 = scalar_select %p105, %s109, 0.0
    %v111 = vmul.f32 %v100, %v104
    %v112 = vrot.slane %v111, 4
    %v113 = vadd.f32 %v111, %v112
    %v114 = vrot.slane %v113, 2
    %v115 = vadd.f32 %v113, %v114
    %v116 = vrot.slane %v115, 1
    %v117 = vadd.f32 %v115, %v116
    %v118 = vstv %s110
    %v119 = vmul.f32 %v117, %v118
    %s120 = scalar_select %p105, 1.0, 0.0
    %v121 = vstv %s120
    %s122 = sadd.s32 %s60, 2
    %s123 = sld [smem:[#allocation3 + %s122]]
    %s124 = sld [smem:[#allocation4 + %s122]]
    %s125 = sshra.s32 %s123, 3
    %s126 = sand.u32 %s123, 7
    %s127 = smul.addr %s125, 4
    %s128 = scalar_lea.vmem [#allocation5], %s127
    %v129 = vld [vmem:[%s128] sm:$0xf]
    %v130 = vunpack.c.l.bf16 %v129
    %v131 = vstv %s124
    %vm132 = vcmp.lt.s32.totalorder %v70, %v131
    %v133 = vsel %vm132, 1, 0
    %v134 = vcvt.s32.f32 %v133
    %p135 = scmp.gt.s32.totalorder %s124, 0
    %s136 = scvt.s32.f32 %s124
    %v137 = vstv %s136
    %v138 = vrcp.pop %v137
    %s139 = vtos %v138
    %s140 = scalar_select %p135, %s139, 0.0
    %v141 = vmul.f32 %v130, %v134
    %v142 = vrot.slane %v141, 4
    %v143 = vadd.f32 %v141, %v142
    %v144 = vrot.slane %v143, 2
    %v145 = vadd.f32 %v143, %v144
    %v146 = vrot.slane %v145, 1
    %v147 = vadd.f32 %v145, %v146
    %v148 = vstv %s140
    %v149 = vmul.f32 %v147, %v148
    %s150 = scalar_select %p135, 1.0, 0.0
    %v151 = vstv %s150
    %s152 = sadd.s32 %s60, 3
    %s153 = sld [smem:[#allocation3 + %s152]]
    %s154 = sld [smem:[#allocation4 + %s152]]
    %s155 = sshra.s32 %s153, 3
    %s156 = sand.u32 %s153, 7
    %s157 = smul.addr %s155, 4
    %s158 = scalar_lea.vmem [#allocation5], %s157
    %v159 = vld [vmem:[%s158] sm:$0xf]
    %v160 = vunpack.c.l.bf16 %v159
    %v161 = vstv %s154
    %vm162 = vcmp.lt.s32.totalorder %v70, %v161
    %v163 = vsel %vm162, 1, 0
    %v164 = vcvt.s32.f32 %v163
    %p165 = scmp.gt.s32.totalorder %s154, 0
    %s166 = scvt.s32.f32 %s154
    %v167 = vstv %s166
    %v168 = vrcp.pop %v167
    %s169 = vtos %v168
    %s170 = scalar_select %p165, %s169, 0.0
    %v171 = vmul.f32 %v160, %v164
    %v172 = vrot.slane %v171, 4
    %v173 = vadd.f32 %v171, %v172
    %v174 = vrot.slane %v173, 2
    %v175 = vadd.f32 %v173, %v174
    %v176 = vrot.slane %v175, 1
    %v177 = vadd.f32 %v175, %v176
    %v178 = vstv %s170
    %v179 = vmul.f32 %v177, %v178
    %s180 = scalar_select %p165, 1.0, 0.0
    %v181 = vstv %s180
    %s182 = sadd.s32 %s60, 4
    %s183 = sld [smem:[#allocation3 + %s182]]
    %s184 = sld [smem:[#allocation4 + %s182]]
    %s185 = sshra.s32 %s183, 3
    %s186 = sand.u32 %s183, 7
    %s187 = smul.addr %s185, 4
    %s188 = scalar_lea.vmem [#allocation5], %s187
    %v189 = vld [vmem:[%s188] sm:$0xf]
    %v190 = vunpack.c.l.bf16 %v189
    %v191 = vstv %s184
    %vm192 = vcmp.lt.s32.totalorder %v70, %v191
    %v193 = vsel %vm192, 1, 0
    %v194 = vcvt.s32.f32 %v193
    %p195 = scmp.gt.s32.totalorder %s184, 0
    %s196 = scvt.s32.f32 %s184
    %v197 = vstv %s196
    %v198 = vrcp.pop %v197
    %s199 = vtos %v198
    %s200 = scalar_select %p195, %s199, 0.0
    %v201 = vmul.f32 %v190, %v194
    %v202 = vrot.slane %v201, 4
    %v203 = vadd.f32 %v201, %v202
    %v204 = vrot.slane %v203, 2
    %v205 = vadd.f32 %v203, %v204
    %v206 = vrot.slane %v205, 1
    %v207 = vadd.f32 %v205, %v206
    %v208 = vstv %s200
    %v209 = vmul.f32 %v207, %v208
    %s210 = scalar_select %p195, 1.0, 0.0
    %v211 = vstv %s210
    %s212 = sadd.s32 %s60, 5
    %s213 = sld [smem:[#allocation3 + %s212]]
    %s214 = sld [smem:[#allocation4 + %s212]]
    %s215 = sshra.s32 %s213, 3
    %s216 = sand.u32 %s213, 7
    %s217 = smul.addr %s215, 4
    %s218 = scalar_lea.vmem [#allocation5], %s217
    %v219 = vld [vmem:[%s218] sm:$0xf]
    %v220 = vunpack.c.l.bf16 %v219
    %v221 = vstv %s214
    %vm222 = vcmp.lt.s32.totalorder %v70, %v221
    %v223 = vsel %vm222, 1, 0
    %v224 = vcvt.s32.f32 %v223
    %p225 = scmp.gt.s32.totalorder %s214, 0
    %s226 = scvt.s32.f32 %s214
    %v227 = vstv %s226
    %v228 = vrcp.pop %v227
    %s229 = vtos %v228
    %s230 = scalar_select %p225, %s229, 0.0
    %v231 = vmul.f32 %v220, %v224
    %v232 = vrot.slane %v231, 4
    %v233 = vadd.f32 %v231, %v232
    %v234 = vrot.slane %v233, 2
    %v235 = vadd.f32 %v233, %v234
    %v236 = vrot.slane %v235, 1
    %v237 = vadd.f32 %v235, %v236
    %v238 = vstv %s230
    %v239 = vmul.f32 %v237, %v238
    %s240 = scalar_select %p225, 1.0, 0.0
    %v241 = vstv %s240
    %s242 = sadd.s32 %s60, 6
    %s243 = sld [smem:[#allocation3 + %s242]]
    %s244 = sld [smem:[#allocation4 + %s242]]
    %s245 = sshra.s32 %s243, 3
    %s246 = sand.u32 %s243, 7
    %s247 = smul.addr %s245, 4
    %s248 = scalar_lea.vmem [#allocation5], %s247
    %v249 = vld [vmem:[%s248] sm:$0xf]
    %v250 = vunpack.c.l.bf16 %v249
    %v251 = vstv %s244
    %vm252 = vcmp.lt.s32.totalorder %v70, %v251
    %v253 = vsel %vm252, 1, 0
    %v254 = vcvt.s32.f32 %v253
    %p255 = scmp.gt.s32.totalorder %s244, 0
    %s256 = scvt.s32.f32 %s244
    %v257 = vstv %s256
    %v258 = vrcp.pop %v257
    %s259 = vtos %v258
    %s260 = scalar_select %p255, %s259, 0.0
    %v261 = vmul.f32 %v250, %v254
    %v262 = vrot.slane %v261, 4
    %v263 = vadd.f32 %v261, %v262
    %v264 = vrot.slane %v263, 2
    %v265 = vadd.f32 %v263, %v264
    %v266 = vrot.slane %v265, 1
    %v267 = vadd.f32 %v265, %v266
    %v268 = vstv %s260
    %v269 = vmul.f32 %v267, %v268
    %s270 = scalar_select %p255, 1.0, 0.0
    %v271 = vstv %s270
    %s272 = sadd.s32 %s60, 7
    %s273 = sld [smem:[#allocation3 + %s272]]
    %s274 = sld [smem:[#allocation4 + %s272]]
    %s275 = sshra.s32 %s273, 3
    %s276 = sand.u32 %s273, 7
    %s277 = smul.addr %s275, 4
    %s278 = scalar_lea.vmem [#allocation5], %s277
    %v279 = vld [vmem:[%s278] sm:$0xf]
    %v280 = vunpack.c.l.bf16 %v279
    %v281 = vstv %s274
    %vm282 = vcmp.lt.s32.totalorder %v70, %v281
    %v283 = vsel %vm282, 1, 0
    %v284 = vcvt.s32.f32 %v283
    %p285 = scmp.gt.s32.totalorder %s274, 0
    %s286 = scvt.s32.f32 %s274
    %v287 = vstv %s286
    %v288 = vrcp.pop %v287
    %s289 = vtos %v288
    %s290 = scalar_select %p285, %s289, 0.0
    %v291 = vmul.f32 %v280, %v284
    %v292 = vrot.slane %v291, 4
    %v293 = vadd.f32 %v291, %v292
    %v294 = vrot.slane %v293, 2
    %v295 = vadd.f32 %v293, %v294
    %v296 = vrot.slane %v295, 1
    %v297 = vadd.f32 %v295, %v296
    %v298 = vstv %s290
    %v299 = vmul.f32 %v297, %v298
    %s300 = scalar_select %p285, 1.0, 0.0
    %v301 = vstv %s300
    %vm302 = vcmask 1040384
    %v303 = vsel %vm302, %v89, %v119
    %vm304 = vcmask 1041408
    %v305 = vsel %vm304, %v303, %v149
    %vm306 = vcmask 1042432
    %v307 = vsel %vm306, %v305, %v179
    %vm308 = vcmask 1043456
    %v309 = vsel %vm308, %v307, %v209
    %vm310 = vcmask 1044480
    %v311 = vsel %vm310, %v309, %v239
    %vm312 = vcmask 1045504
    %v313 = vsel %vm312, %v311, %v269
    %vm314 = vcmask 1046528
    %v315 = vsel %vm314, %v313, %v299
    %v316 = vsel %vm302, %v91, %v121
    %v317 = vsel %vm304, %v316, %v151
    %v318 = vsel %vm306, %v317, %v181
    %v319 = vsel %vm308, %v318, %v211
    %v320 = vsel %vm310, %v319, %v241
    %v321 = vsel %vm312, %v320, %v271
    %v322 = vsel %vm314, %v321, %v301
    %v323 = vpack.c.bf16 %v315, %v315
    %v324 = vld [vmem:[#allocation8] sm:$0xf]
    %v325 = vld [vmem:[#allocation8 + $0x4] sm:$0xf]
    %v326 = vld [vmem:[#allocation8 + $0x8] sm:$0xf]
    %v327 = vld [vmem:[#allocation8 + $0xc] sm:$0xf]
    %v328 = vld [vmem:[#allocation8 + $0x10] sm:$0xf]
    %v329 = vld [vmem:[#allocation8 + $0x14] sm:$0xf]
    %v330 = vld [vmem:[#allocation8 + $0x18] sm:$0xf]
    %v331 = vld [vmem:[#allocation8 + $0x1c] sm:$0xf]
    %v332 = vld [vmem:[#allocation8 + $0x20] sm:$0xf]
    %v333 = vld [vmem:[#allocation8 + $0x24] sm:$0xf]
    %v334 = vld [vmem:[#allocation8 + $0x28] sm:$0xf]
    %v335 = vld [vmem:[#allocation8 + $0x2c] sm:$0xf]
    %v336 = vld [vmem:[#allocation8 + $0x30] sm:$0xf]
    %v337 = vld [vmem:[#allocation8 + $0x34] sm:$0xf]
    %v338 = vld [vmem:[#allocation8 + $0x38] sm:$0xf]
    %v339 = vld [vmem:[#allocation8 + $0x3c] sm:$0xf]
    %v340 = vld [vmem:[%s4] sm:$0x1]
    %v342 = vlaneseq
    %v343 = vshrl.u32 %v342, 7
    %v344 = vsub.s32 0, %v343
    %v345 = vrot.slane %v340, %v344
    %v363 = vunpack.c.l.b16 %v324
    %v364 = vunpack.c.l.b16 %v325
    %v365 = vunpack.c.l.b16 %v326
    %v366 = vunpack.c.l.b16 %v327
    %v367 = vunpack.c.l.b16 %v328
    %v368 = vunpack.c.l.b16 %v329
    %v369 = vunpack.c.l.b16 %v330
    %v370 = vunpack.c.l.b16 %v331
    %v371 = vunpack.c.l.b16 %v332
    %v372 = vunpack.c.l.b16 %v333
    %v373 = vunpack.c.l.b16 %v334
    %v374 = vunpack.c.l.b16 %v335
    %v375 = vunpack.c.l.b16 %v336
    %v376 = vunpack.c.l.b16 %v337
    %v377 = vunpack.c.l.b16 %v338
    %v378 = vunpack.c.l.b16 %v339
    %v379 = vpack.c.b16 %v364, %v363
    %v380 = vpack.c.b16 %v366, %v365
    %v381 = vpack.c.b16 %v368, %v367
    %v382 = vpack.c.b16 %v370, %v369
    %v383 = vpack.c.b16 %v372, %v371
    %v384 = vpack.c.b16 %v374, %v373
    %v385 = vpack.c.b16 %v376, %v375
    %v386 = vpack.c.b16 %v378, %v377
    %395 = vmatprep.subr.bf16.mxu0 0
    %396 = vmatpush1.bf16.msra.mxu0 %v379
    %397 = vmatprep.subr.bf16.mxu0 0
    %398 = vmatpush1.bf16.msra.mxu0 %v380
    %399 = vmatprep.subr.bf16.mxu0 0
    %400 = vmatpush1.bf16.msra.mxu0 %v381
    %401 = vmatprep.subr.bf16.mxu0 0
    %402 = vmatpush1.bf16.msra.mxu0 %v382
    %403 = vmatprep.subr.bf16.mxu0 0
    %404 = vmatpush1.bf16.msra.mxu0 %v383
    %405 = vmatprep.subr.bf16.mxu0 0
    %406 = vmatpush1.bf16.msra.mxu0 %v384
    %407 = vmatprep.subr.bf16.mxu0 0
    %408 = vmatpush1.bf16.msra.mxu0 %v385
    %409 = vmatprep.subr.bf16.mxu0 0
    %410 = vmatpush1.bf16.msra.mxu0 %v386
    %411 = vmatprep.subr.bf16.mxu0 0
    %412 = vmatpush1.bf16.msra.mxu0 0
    %413 = vmatprep.subr.bf16.mxu0 0
    %414 = vmatpush1.bf16.msra.mxu0 0
    %415 = vmatprep.subr.bf16.mxu0 0
    %416 = vmatpush1.bf16.msra.mxu0 0
    %417 = vmatprep.subr.bf16.mxu0 0
    %418 = vmatpush1.bf16.msra.mxu0 0
    %419 = vmatprep.subr.bf16.mxu0 0
    %420 = vmatpush1.bf16.msra.mxu0 0
    %421 = vmatprep.subr.bf16.mxu0 0
    %422 = vmatpush1.bf16.msra.mxu0 0
    %423 = vmatprep.subr.bf16.mxu0 0
    %424 = vmatpush1.bf16.msra.mxu0 0
    %425 = vmatprep.subr.bf16.mxu0 0
    %426 = vmatpush1.bf16.msra.mxu0 0
    %427 = vmatprep.mubr.bf16.mxu0 0
    %428 = vmatmul.mubr.bf16.gmra.mrb[0].mxu0 %v323
    %v429 = vpop.f32.mrb[0].mxu0
    %v430 = vadd.f32 %v345, %v429
    %v431 = vpop.f32.mrb[0].mxu0
    %v432 = vpop.f32.mrb[0].mxu0
    %v433 = vpop.f32.mrb[0].mxu0
    %434 = vdwg.mxu0
    %435 = vst [vmem:[#allocation10] sm:$0xff] %v430
    %v436 = vld [vmem:[%s5] sm:$0xff]
    %v437 = vmax.f32 %v430, 0.0
    %v438 = vmul.f32 %v430, %v436
    %v439 = vsub.f32 %v437, %v438
    %v440 = vand.u32 2147483647, %v430
    %v441 = vsub.f32 0.0, %v440
    %v442 = vmul.f32 %v441, 1.442695
    %v443 = vpow.pop %v442
    %v444 = vadd.f32 %v443, 1.0
    %v445 = vlog2.pop %v444
    %v446 = vmul.f32 %v445, 0.6931472
    %v447 = vmul.f32 -0.5, %v443
    %v448 = vadd.f32 %v447, 1.0
    %v449 = vmul.f32 %v448, %v443
    %v450 = vand.u32 2147483647, %v443
    %vm451 = vcmp.lt.f32.partialorder %v450, 0.0004427343
    %v452 = vsel %vm451, %v449, %v446
    %v453 = vadd.f32 %v439, %v452
    %v454 = vlaneseq
    %v455 = vand.u32 %v454, 127
    %vm456 = vcmp.lt.s32.totalorder %v455, 4
    %v457 = vsel %vm456, 1, 0
    %v458 = vcvt.s32.f32 %v457
    %v459 = vmul.f32 %v453, %v322
    %v460 = vmul.f32 %v459, %v458
    %461 = vst [vmem:[#allocation11] sm:$0xff] %v460
    // Predicated region
    $region26: #{tpu_custom_call.1} parent=1 // pred_check
      _
    $region27: #{tpu_custom_call.1} parent=1 // pred_check_branch
      %463 = sbr.rel (0) target = $region29
    $region28: #{tpu_custom_call.1} parent=1 // pred_region
      %s465 = ssub.s32 128, 128
      %466 = vsyncadd [#allocation7], %s465
      %s468 = sshll.u32 [#allocation10], 4
      %s469 = int_to_ptr.vmem [resolvable:$true] %s468
      %471 = dma.vmem_to_hbm [thread:$0]  %s469, 128, %s6, [#allocation7]
    $region29: #{tpu_custom_call.1} parent=1 // pred_fallthru
      _
    // Predicated region
    $region30: #{tpu_custom_call.1} parent=1 // pred_check
      _
    $region31: #{tpu_custom_call.1} parent=1 // pred_check_branch
      %473 = sbr.rel (0) target = $region33
    $region32: #{tpu_custom_call.1} parent=1 // pred_region
      %s475 = ssub.s32 128, 128
      %476 = vsyncadd [#allocation12], %s475
      %s478 = sshll.u32 [#allocation11], 4
      %s479 = int_to_ptr.vmem [resolvable:$true] %s478
      %481 = dma.vmem_to_hbm [thread:$0]  %s479, 128, %s7, [#allocation12]
    $region33: #{tpu_custom_call.1} parent=1 // pred_fallthru
      _
    // Predicated region
    $region34: #{tpu_custom_call.1} parent=1 // pred_check
      _
    $region35: #{tpu_custom_call.1} parent=1 // pred_check_branch
      %483 = sbr.rel (0) target = $region37
    $region36: #{tpu_custom_call.1} parent=1 // pred_region
      %484 = dma.done [#allocation7], 128
    $region37: #{tpu_custom_call.1} parent=1 // pred_fallthru
      _
    // Predicated region
    $region38: #{tpu_custom_call.1} parent=1 // pred_check
      _
    $region39: #{tpu_custom_call.1} parent=1 // pred_check_branch
      %486 = sbr.rel (0) target = $region41
    $region40: #{tpu_custom_call.1} parent=1 // pred_region
      %487 = dma.done [#allocation12], 128
    $region41: #{tpu_custom_call.1} parent=1 // pred_fallthru
      _
    %488 = vsyncpa [#allocation6], 1
    %489 = vsyncpa [#allocation9], 1
    %490 = vsyncpa [#allocation7], 1
    %491 = vsyncpa [#allocation12], 1

</llo_original>
